<compile_context>
chip_gen: v6e
topology: v6e:2x2x1
jax: 0.10.0
libtpu: 0.0.40
codegen_flags: <defaults>
</compile_context>

<pallas_src>
import functools

import jax
import jax.numpy as jnp
from jax import lax
from jax.experimental import pallas as pl
from jax.experimental.pallas import tpu as pltpu

BN_EPS = 1e-5

# The 8 off-centre 3x3 taps, in mask-row order.
_OFFSETS = tuple((dy, dx) for dy in (-1, 0, 1) for dx in (-1, 0, 1)
                 if not (dy == 0 and dx == 0))


def _tap_table(width, lane_len):
    """(roll_shift, kernel_index) per off-centre tap; rolls are along the flat
    spatial (lane) axis of length `lane_len`, shift normalised non-negative."""
    taps = []
    for dy, dx in _OFFSETS:
        d = dy * width + dx                     # neighbour offset in flat H*W
        k = (dy + 1) * 3 + (dx + 1)             # row-major 3x3 kernel index
        taps.append((int((-d) % lane_len), k))
    return tuple(taps)


def _edge_masks(H, W, HW, HWp):
    """(8, HWp) f32 masks: tap t valid at flat position p (also zero in pad)."""
    pos = jnp.arange(HWp, dtype=jnp.int32)
    hh = pos // W
    ww = pos % W
    valid = pos < HW
    rows = []
    for dy, dx in _OFFSETS:
        m = valid & (hh + dy >= 0) & (hh + dy < H) & (ww + dx >= 0) & (ww + dx < W)
        rows.append(m)
    return jnp.stack(rows, axis=0).astype(jnp.float32)


def _conv_taps(x, wv, m_ref, taps):
    """Depthwise 3x3 conv on a (A, Cb, L) slab via 8 independent rolls+masks."""
    acc = x * wv[:, 4:5]                        # centre tap (k = 4) as init
    for t, (shift, k) in enumerate(taps):
        tap = pltpu.roll(x, shift=shift, axis=2) * m_ref[t:t + 1, :]
        acc = acc + tap * wv[:, k:k + 1]        # per-channel weight on sublanes
    return acc


def _dwconv_single_pass_kernel(w_ref, p_ref, m_ref, x_ref, o_ref, *, taps, count):
    """One grid step = one channel block, full (A, Cb, L) slab resident.

    w_ref: (Cb, 9) f32 flattened 3x3 depthwise weights
    p_ref: (Cb, 3) f32 [gamma, beta, prelu_alpha]
    m_ref: (8, L)  f32 per-tap edge/pad masks
    x_ref/o_ref: (A, Cb, L) input / output block (spatial on lanes)
    """
    x = x_ref[...].astype(jnp.float32)
    wv = w_ref[...]
    acc = _conv_taps(x, wv, m_ref, taps)

    # BatchNorm training-mode stats over (N, H, W); pad positions hold exact
    # zeros in acc, so sums are exact and `count` is the real element count.
    inv_cnt = jnp.float32(1.0 / count)
    s1 = jnp.sum(jnp.sum(acc, axis=2, keepdims=True), axis=0, keepdims=True)
    s2 = jnp.sum(jnp.sum(acc * acc, axis=2, keepdims=True), axis=0, keepdims=True)
    mean = s1 * inv_cnt                         # (1, Cb, 1)
    var = s2 * inv_cnt - mean * mean            # biased variance

    gamma = p_ref[:, 0:1]
    beta = p_ref[:, 1:2]
    alpha = p_ref[:, 2:3]
    scale = gamma * lax.rsqrt(var + BN_EPS)     # fused BN affine
    shift_b = beta - mean * scale

    y = acc * scale + shift_b
    y = jnp.where(y >= 0.0, y, alpha * y)       # per-channel PReLU
    o_ref[...] = y.astype(o_ref.dtype)


def _dwconv_two_pass_kernel(w_ref, p_ref, m_ref, x_ref, o_ref, s1_ref, s2_ref,
                            *, taps, count):
    """Two-pass BN for blocks that cannot hold the whole batch in VMEM.

    grid = (C_blocks, pass, N_blocks). Pass 0: conv + accumulate per-channel
    sum / sum-of-squares into VMEM scratch. Pass 1: recompute conv, normalise
    with the completed stats, apply PReLU, write output.
    """
    p = pl.program_id(1)
    n = pl.program_id(2)

    x = x_ref[...].astype(jnp.float32)
    wv = w_ref[...]
    acc = _conv_taps(x, wv, m_ref, taps)

    @pl.when(jnp.logical_and(p == 0, n == 0))
    def _():
        s1_ref[...] = jnp.zeros_like(s1_ref)
        s2_ref[...] = jnp.zeros_like(s2_ref)

    @pl.when(p == 0)
    def _():
        s1_ref[...] += jnp.sum(jnp.sum(acc, axis=2, keepdims=True), axis=0)
        s2_ref[...] += jnp.sum(jnp.sum(acc * acc, axis=2, keepdims=True), axis=0)

    @pl.when(p == 1)
    def _():
        inv_cnt = jnp.float32(1.0 / count)
        mean = s1_ref[...] * inv_cnt            # (Cb, 1)
        var = s2_ref[...] * inv_cnt - mean * mean
        gamma = p_ref[:, 0:1]
        beta = p_ref[:, 1:2]
        alpha = p_ref[:, 2:3]
        scale = gamma * lax.rsqrt(var + BN_EPS)
        shift_b = beta - mean * scale
        y = acc * scale + shift_b
        y = jnp.where(y >= 0.0, y, alpha * y)
        o_ref[...] = y.astype(o_ref.dtype)


def _vmem_limit_bytes():
    """Scoped-VMEM limit derived from the chip's physical VMEM (v7x-safe)."""
    phys = 64 * 1024 * 1024                     # v7x: 64 MiB per TensorCore
    try:
        info = pltpu.get_tpu_info()
        phys = int(getattr(info, "vmem_capacity_bytes", phys))
    except Exception:
        pass
    return min((phys * 3) // 4, 96 * 1024 * 1024)


def _channel_block_candidates(C):
    """Channel blocks that satisfy the sublane rule: multiple of 8, or C itself."""
    cands = [d for d in range(8, C, 8) if C % d == 0]
    cands.append(C)
    return cands                                # ascending


def dwconv(x, w, gamma, beta, alpha, *, block_budget_bytes=None):
    """Fused DWConv forward.

    x: (N, C, H, W); w: (C, 3, 3) depthwise weights (PyTorch (C,1,3,3) squeezed);
    gamma/beta: (C,) BatchNorm affine; alpha: (C,) PReLU slopes.
    """
    N, C, H, W = x.shape
    HW = H * W
    HWp = ((HW + 127) // 128) * 128             # lane-dense: multiple of 128

    x2 = x.reshape(N, C, HW)
    if HWp != HW:
        x2 = jnp.pad(x2, ((0, 0), (0, 0), (0, HWp - HW)))
    w2 = w.reshape(C, 9).astype(jnp.float32)
    params = jnp.stack([gamma, beta, alpha], axis=1).astype(jnp.float32)  # (C,3)
    masks = _edge_masks(H, W, HW, HWp)          # (8, HWp)

    vmem_limit = _vmem_limit_bytes()
    # Live VMEM ~= 2x(in+out double buffers) + ~6 full-slab f32 temporaries.
    budget = (block_budget_bytes if block_budget_bytes is not None
              else vmem_limit // 10)
    count = N * HW
    cands = _channel_block_candidates(C)

    single_cparams = pltpu.CompilerParams(
        dimension_semantics=("parallel",), vmem_limit_bytes=vmem_limit)

    # Largest channel block whose full-batch slab fits the budget.
    single_cb = None
    for cb in cands:
        if N * cb * HWp * 4 <= budget:
            single_cb = cb
    # Prefer >= 2 grid steps so both v7x TensorCores get work.
    if single_cb is not None and C // single_cb == 1:
        for cb in reversed(cands):
            if cb < single_cb and cb >= 8:
                single_cb = cb
                break

    if single_cb is not None and C < 8:
        # Small C: fold the batch onto the lane axis so channel sublanes are
        # full; masks are tiled per image (rolls never leak across images
        # because image-edge taps are already masked).
        L = N * HWp
        xt = jnp.transpose(x2, (1, 0, 2)).reshape(1, C, L)
        mt = jnp.tile(masks, (1, N))
        taps = _tap_table(W, L)
        kern = functools.partial(_dwconv_single_pass_kernel, taps=taps, count=count)
        out_t = pl.pallas_call(
            kern,
            out_shape=jax.ShapeDtypeStruct((1, C, L), x.dtype),
            grid=(1,),
            in_specs=[
                pl.BlockSpec((C, 9), lambda c: (c, 0)),
                pl.BlockSpec((C, 3), lambda c: (c, 0)),
                pl.BlockSpec((8, L), lambda c: (0, 0)),
                pl.BlockSpec((1, C, L), lambda c: (0, c, 0)),
            ],
            out_specs=pl.BlockSpec((1, C, L), lambda c: (0, c, 0)),
            compiler_params=single_cparams,
        )(w2, params, mt, xt)
        out2 = jnp.transpose(out_t.reshape(C, N, HWp), (1, 0, 2))
    elif single_cb is not None:
        # Single-pass exact BN: whole (N, Cb, HWp) slab resident per step.
        Cb = single_cb
        taps = _tap_table(W, HWp)
        kern = functools.partial(_dwconv_single_pass_kernel, taps=taps, count=count)
        out2 = pl.pallas_call(
            kern,
            out_shape=jax.ShapeDtypeStruct((N, C, HWp), x.dtype),
            grid=(C // Cb,),
            in_specs=[
                pl.BlockSpec((Cb, 9), lambda c: (c, 0)),
                pl.BlockSpec((Cb, 3), lambda c: (c, 0)),
                pl.BlockSpec((8, HWp), lambda c: (0, 0)),
                pl.BlockSpec((N, Cb, HWp), lambda c: (0, c, 0)),
            ],
            out_specs=pl.BlockSpec((N, Cb, HWp), lambda c: (0, c, 0)),
            compiler_params=single_cparams,
        )(w2, params, masks, x2)
    else:
        # Two-pass BN: split the batch axis so no block needs the full slab.
        Cb = cands[0]
        Nb = 1
        for d in range(N, 0, -1):
            if N % d == 0 and d * Cb * HWp * 4 <= budget:
                Nb = d
                break
        # TODO(synk): if even (1, Cb, HWp) exceeds the budget, additionally
        # split image rows (needs a 1-row halo per spatial block).
        taps = _tap_table(W, HWp)
        kern = functools.partial(_dwconv_two_pass_kernel, taps=taps, count=count)
        out2 = pl.pallas_call(
            kern,
            out_shape=jax.ShapeDtypeStruct((N, C, HWp), x.dtype),
            grid=(C // Cb, 2, N // Nb),
            in_specs=[
                pl.BlockSpec((Cb, 9), lambda c, p, n: (c, 0)),
                pl.BlockSpec((Cb, 3), lambda c, p, n: (c, 0)),
                pl.BlockSpec((8, HWp), lambda c, p, n: (0, 0)),
                pl.BlockSpec((Nb, Cb, HWp), lambda c, p, n: (n, c, 0)),
            ],
            # Pass 0 parks the output buffer on block (0, c, 0) (nothing useful
            # written); pass 1 writes every batch block with final values.
            out_specs=pl.BlockSpec((Nb, Cb, HWp), lambda c, p, n: (n * p, c, 0)),
            scratch_shapes=[pltpu.VMEM((Cb, 1), jnp.float32),
                            pltpu.VMEM((Cb, 1), jnp.float32)],
            compiler_params=pltpu.CompilerParams(
                dimension_semantics=("parallel", "arbitrary", "arbitrary"),
                vmem_limit_bytes=vmem_limit),
        )(w2, params, masks, x2)

    return out2[:, :, :HW].reshape(N, C, H, W)


def dwconv_ref(x, w, gamma, beta, alpha):
    """Pure-JAX reference (matches PyTorch training-mode forward)."""
    C = x.shape[1]
    y = lax.conv_general_dilated(
        x, w[:, None, :, :], window_strides=(1, 1), padding=((1, 1), (1, 1)),
        dimension_numbers=("NCHW", "OIHW", "NCHW"), feature_group_count=C)
    mean = jnp.mean(y, axis=(0, 2, 3), keepdims=True)
    var = jnp.mean((y - mean) ** 2, axis=(0, 2, 3), keepdims=True)
    yn = (y - mean) * lax.rsqrt(var + BN_EPS)
    yn = yn * gamma[None, :, None, None] + beta[None, :, None, None]
    a = alpha[None, :, None, None]
    return jnp.where(yn >= 0.0, yn, a * yn)


if __name__ == "__main__":
    # Primary shape (module-consistent, small): exercises the small-C
    # (batch-folded-onto-lanes) single-pass path.
    N, C, H, W = 2, 4, 16, 16
    key = jax.random.PRNGKey(0)
    k1, k2, k3, k4 = jax.random.split(key, 4)

    x = jax.random.normal(k1, (N, C, H, W), jnp.float32)
    w = 0.1 * jax.random.normal(k2, (C, 3, 3), jnp.float32)       # dw conv weight
    gamma = 1.0 + 0.1 * jax.random.normal(k3, (C,), jnp.float32)  # BN weight
    beta = 0.1 * jax.random.normal(k4, (C,), jnp.float32)         # BN bias
    alpha = jnp.full((C,), 0.25, jnp.float32)                     # PReLU default

    out = dwconv(x, w, gamma, beta, alpha)
    jax.block_until_ready(out)
    ref = dwconv_ref(x, w, gamma, beta, alpha)
    assert out.shape == (N, C, H, W)
    assert jnp.allclose(out, ref, rtol=2e-4, atol=2e-4), "mismatch (small-C path)"

    # Secondary shape: exercises the standard C>=8 layout with lane padding
    # (H*W=64 -> 128) and, with a forced tiny budget, the two-pass BN path.
    N2, C2, H2, W2 = 2, 16, 8, 8
    kk = jax.random.split(jax.random.PRNGKey(1), 4)
    x2 = jax.random.normal(kk[0], (N2, C2, H2, W2), jnp.float32)
    w2 = 0.1 * jax.random.normal(kk[1], (C2, 3, 3), jnp.float32)
    g2 = 1.0 + 0.1 * jax.random.normal(kk[2], (C2,), jnp.float32)
    b2 = 0.1 * jax.random.normal(kk[3], (C2,), jnp.float32)
    a2 = jnp.full((C2,), 0.25, jnp.float32)
    ref2 = dwconv_ref(x2, w2, g2, b2, a2)

    out_std = dwconv(x2, w2, g2, b2, a2)                              # single-pass
    out_2p = dwconv(x2, w2, g2, b2, a2, block_budget_bytes=4096)      # two-pass
    jax.block_until_ready((out_std, out_2p))
    assert jnp.allclose(out_std, ref2, rtol=2e-4, atol=2e-4), "mismatch (std path)"
    assert jnp.allclose(out_2p, ref2, rtol=2e-4, atol=2e-4), "mismatch (two-pass)"

    print("KERNEL_OK")
</pallas_src>

<mosaic_0001>
module attributes {stable_mosaic.version = 11 : i64} {
  func.func @_dwconv_single_pass_kernel(%arg0: i32, %arg1: memref<4x9xf32, #tpu.memory_space<vmem>>, %arg2: memref<4x3xf32, #tpu.memory_space<vmem>>, %arg3: memref<8x512xf32, #tpu.memory_space<vmem>>, %arg4: memref<1x4x512xf32, #tpu.memory_space<vmem>>, %arg5: memref<1x4x512xf32, #tpu.memory_space<vmem>>) attributes {dimension_semantics = [#tpu.dimension_semantics<parallel>], iteration_bounds = array<i64: 1>, scalar_prefetch = 0 : i64, scratch_operands = 0 : i64, tpu.core_type = #tpu.core_type<tc>, window_params = [{transform_indices = @transform_0, window_bounds = array<i64: 4, 9>}, {transform_indices = @transform_1, window_bounds = array<i64: 4, 3>}, {pipeline_mode = #tpu.pipeline_mode<synchronous>, transform_indices = @transform_2, window_bounds = array<i64: 8, 512>}, {transform_indices = @transform_3, window_bounds = array<i64: 1, 4, 512>}, {transform_indices = @transform_4, window_bounds = array<i64: 1, 4, 512>}]} {
    %c0 = arith.constant 0 : index
    %c0_0 = arith.constant 0 : index
    %c0_1 = arith.constant 0 : index
    %0 = vector.load %arg4[%c0, %c0_0, %c0_1] : memref<1x4x512xf32, #tpu.memory_space<vmem>>, vector<1x4x512xf32>
    %c0_2 = arith.constant 0 : index
    %c0_3 = arith.constant 0 : index
    %1 = vector.load %arg1[%c0_2, %c0_3] : memref<4x9xf32, #tpu.memory_space<vmem>>, vector<4x9xf32>
    %2 = vector.extract_strided_slice %1 {offsets = [0, 4], sizes = [4, 1], strides = [1, 1]} : vector<4x9xf32> to vector<4x1xf32>
    %3 = vector.shape_cast %2 : vector<4x1xf32> to vector<1x4x1xf32>
    %4 = vector.broadcast %3 : vector<1x4x1xf32> to vector<1x4x512xf32>
    %5 = arith.mulf %0, %4 : vector<1x4x512xf32>
    %c17_i32 = arith.constant 17 : i32
    %6 = tpu.dynamic_rotate %0 by %c17_i32 dim 2 : vector<1x4x512xf32>, i32 -> vector<1x4x512xf32>
    %c0_4 = arith.constant 0 : index
    %c0_5 = arith.constant 0 : index
    %7 = vector.load %arg3[%c0_4, %c0_5] : memref<8x512xf32, #tpu.memory_space<vmem>>, vector<1x512xf32>
    %8 = vector.shape_cast %7 : vector<1x512xf32> to vector<1x1x512xf32>
    %9 = vector.broadcast %8 : vector<1x1x512xf32> to vector<1x4x512xf32>
    %10 = arith.mulf %6, %9 : vector<1x4x512xf32>
    %11 = vector.extract_strided_slice %1 {offsets = [0, 0], sizes = [4, 1], strides = [1, 1]} : vector<4x9xf32> to vector<4x1xf32>
    %12 = vector.shape_cast %11 : vector<4x1xf32> to vector<1x4x1xf32>
    %13 = vector.broadcast %12 : vector<1x4x1xf32> to vector<1x4x512xf32>
    %14 = arith.mulf %10, %13 : vector<1x4x512xf32>
    %15 = arith.addf %5, %14 : vector<1x4x512xf32>
    %c16_i32 = arith.constant 16 : i32
    %16 = tpu.dynamic_rotate %0 by %c16_i32 dim 2 : vector<1x4x512xf32>, i32 -> vector<1x4x512xf32>
    %c1 = arith.constant 1 : index
    %c0_6 = arith.constant 0 : index
    %17 = vector.load %arg3[%c1, %c0_6] : memref<8x512xf32, #tpu.memory_space<vmem>>, vector<1x512xf32>
    %18 = vector.shape_cast %17 : vector<1x512xf32> to vector<1x1x512xf32>
    %19 = vector.broadcast %18 : vector<1x1x512xf32> to vector<1x4x512xf32>
    %20 = arith.mulf %16, %19 : vector<1x4x512xf32>
    %21 = vector.extract_strided_slice %1 {offsets = [0, 1], sizes = [4, 1], strides = [1, 1]} : vector<4x9xf32> to vector<4x1xf32>
    %22 = vector.shape_cast %21 : vector<4x1xf32> to vector<1x4x1xf32>
    %23 = vector.broadcast %22 : vector<1x4x1xf32> to vector<1x4x512xf32>
    %24 = arith.mulf %20, %23 : vector<1x4x512xf32>
    %25 = arith.addf %15, %24 : vector<1x4x512xf32>
    %c15_i32 = arith.constant 15 : i32
    %26 = tpu.dynamic_rotate %0 by %c15_i32 dim 2 : vector<1x4x512xf32>, i32 -> vector<1x4x512xf32>
    %c2 = arith.constant 2 : index
    %c0_7 = arith.constant 0 : index
    %27 = vector.load %arg3[%c2, %c0_7] : memref<8x512xf32, #tpu.memory_space<vmem>>, vector<1x512xf32>
    %28 = vector.shape_cast %27 : vector<1x512xf32> to vector<1x1x512xf32>
    %29 = vector.broadcast %28 : vector<1x1x512xf32> to vector<1x4x512xf32>
    %30 = arith.mulf %26, %29 : vector<1x4x512xf32>
    %31 = vector.extract_strided_slice %1 {offsets = [0, 2], sizes = [4, 1], strides = [1, 1]} : vector<4x9xf32> to vector<4x1xf32>
    %32 = vector.shape_cast %31 : vector<4x1xf32> to vector<1x4x1xf32>
    %33 = vector.broadcast %32 : vector<1x4x1xf32> to vector<1x4x512xf32>
    %34 = arith.mulf %30, %33 : vector<1x4x512xf32>
    %35 = arith.addf %25, %34 : vector<1x4x512xf32>
    %c1_i32 = arith.constant 1 : i32
    %36 = tpu.dynamic_rotate %0 by %c1_i32 dim 2 : vector<1x4x512xf32>, i32 -> vector<1x4x512xf32>
    %c3 = arith.constant 3 : index
    %c0_8 = arith.constant 0 : index
    %37 = vector.load %arg3[%c3, %c0_8] : memref<8x512xf32, #tpu.memory_space<vmem>>, vector<1x512xf32>
    %38 = vector.shape_cast %37 : vector<1x512xf32> to vector<1x1x512xf32>
    %39 = vector.broadcast %38 : vector<1x1x512xf32> to vector<1x4x512xf32>
    %40 = arith.mulf %36, %39 : vector<1x4x512xf32>
    %41 = vector.extract_strided_slice %1 {offsets = [0, 3], sizes = [4, 1], strides = [1, 1]} : vector<4x9xf32> to vector<4x1xf32>
    %42 = vector.shape_cast %41 : vector<4x1xf32> to vector<1x4x1xf32>
    %43 = vector.broadcast %42 : vector<1x4x1xf32> to vector<1x4x512xf32>
    %44 = arith.mulf %40, %43 : vector<1x4x512xf32>
    %45 = arith.addf %35, %44 : vector<1x4x512xf32>
    %c511_i32 = arith.constant 511 : i32
    %46 = tpu.dynamic_rotate %0 by %c511_i32 dim 2 : vector<1x4x512xf32>, i32 -> vector<1x4x512xf32>
    %c4 = arith.constant 4 : index
    %c0_9 = arith.constant 0 : index
    %47 = vector.load %arg3[%c4, %c0_9] : memref<8x512xf32, #tpu.memory_space<vmem>>, vector<1x512xf32>
    %48 = vector.shape_cast %47 : vector<1x512xf32> to vector<1x1x512xf32>
    %49 = vector.broadcast %48 : vector<1x1x512xf32> to vector<1x4x512xf32>
    %50 = arith.mulf %46, %49 : vector<1x4x512xf32>
    %51 = vector.extract_strided_slice %1 {offsets = [0, 5], sizes = [4, 1], strides = [1, 1]} : vector<4x9xf32> to vector<4x1xf32>
    %52 = vector.shape_cast %51 : vector<4x1xf32> to vector<1x4x1xf32>
    %53 = vector.broadcast %52 : vector<1x4x1xf32> to vector<1x4x512xf32>
    %54 = arith.mulf %50, %53 : vector<1x4x512xf32>
    %55 = arith.addf %45, %54 : vector<1x4x512xf32>
    %c497_i32 = arith.constant 497 : i32
    %56 = tpu.dynamic_rotate %0 by %c497_i32 dim 2 : vector<1x4x512xf32>, i32 -> vector<1x4x512xf32>
    %c5 = arith.constant 5 : index
    %c0_10 = arith.constant 0 : index
    %57 = vector.load %arg3[%c5, %c0_10] : memref<8x512xf32, #tpu.memory_space<vmem>>, vector<1x512xf32>
    %58 = vector.shape_cast %57 : vector<1x512xf32> to vector<1x1x512xf32>
    %59 = vector.broadcast %58 : vector<1x1x512xf32> to vector<1x4x512xf32>
    %60 = arith.mulf %56, %59 : vector<1x4x512xf32>
    %61 = vector.extract_strided_slice %1 {offsets = [0, 6], sizes = [4, 1], strides = [1, 1]} : vector<4x9xf32> to vector<4x1xf32>
    %62 = vector.shape_cast %61 : vector<4x1xf32> to vector<1x4x1xf32>
    %63 = vector.broadcast %62 : vector<1x4x1xf32> to vector<1x4x512xf32>
    %64 = arith.mulf %60, %63 : vector<1x4x512xf32>
    %65 = arith.addf %55, %64 : vector<1x4x512xf32>
    %c496_i32 = arith.constant 496 : i32
    %66 = tpu.dynamic_rotate %0 by %c496_i32 dim 2 : vector<1x4x512xf32>, i32 -> vector<1x4x512xf32>
    %c6 = arith.constant 6 : index
    %c0_11 = arith.constant 0 : index
    %67 = vector.load %arg3[%c6, %c0_11] : memref<8x512xf32, #tpu.memory_space<vmem>>, vector<1x512xf32>
    %68 = vector.shape_cast %67 : vector<1x512xf32> to vector<1x1x512xf32>
    %69 = vector.broadcast %68 : vector<1x1x512xf32> to vector<1x4x512xf32>
    %70 = arith.mulf %66, %69 : vector<1x4x512xf32>
    %71 = vector.extract_strided_slice %1 {offsets = [0, 7], sizes = [4, 1], strides = [1, 1]} : vector<4x9xf32> to vector<4x1xf32>
    %72 = vector.shape_cast %71 : vector<4x1xf32> to vector<1x4x1xf32>
    %73 = vector.broadcast %72 : vector<1x4x1xf32> to vector<1x4x512xf32>
    %74 = arith.mulf %70, %73 : vector<1x4x512xf32>
    %75 = arith.addf %65, %74 : vector<1x4x512xf32>
    %c495_i32 = arith.constant 495 : i32
    %76 = tpu.dynamic_rotate %0 by %c495_i32 dim 2 : vector<1x4x512xf32>, i32 -> vector<1x4x512xf32>
    %c7 = arith.constant 7 : index
    %c0_12 = arith.constant 0 : index
    %77 = vector.load %arg3[%c7, %c0_12] : memref<8x512xf32, #tpu.memory_space<vmem>>, vector<1x512xf32>
    %78 = vector.shape_cast %77 : vector<1x512xf32> to vector<1x1x512xf32>
    %79 = vector.broadcast %78 : vector<1x1x512xf32> to vector<1x4x512xf32>
    %80 = arith.mulf %76, %79 : vector<1x4x512xf32>
    %81 = vector.extract_strided_slice %1 {offsets = [0, 8], sizes = [4, 1], strides = [1, 1]} : vector<4x9xf32> to vector<4x1xf32>
    %82 = vector.shape_cast %81 : vector<4x1xf32> to vector<1x4x1xf32>
    %83 = vector.broadcast %82 : vector<1x4x1xf32> to vector<1x4x512xf32>
    %84 = arith.mulf %80, %83 : vector<1x4x512xf32>
    %85 = arith.addf %75, %84 : vector<1x4x512xf32>
    %cst = arith.constant dense<0.000000e+00> : vector<1x4xf32>
    %86 = vector.multi_reduction <add>, %85, %cst [2] : vector<1x4x512xf32> to vector<1x4xf32>
    %87 = vector.shape_cast %86 : vector<1x4xf32> to vector<1x4x1xf32>
    %cst_13 = arith.constant dense<0.000000e+00> : vector<4x1xf32>
    %88 = vector.multi_reduction <add>, %87, %cst_13 [0] : vector<1x4x1xf32> to vector<4x1xf32>
    %89 = vector.shape_cast %88 : vector<4x1xf32> to vector<1x4x1xf32>
    %90 = arith.mulf %85, %85 : vector<1x4x512xf32>
    %cst_14 = arith.constant dense<0.000000e+00> : vector<1x4xf32>
    %91 = vector.multi_reduction <add>, %90, %cst_14 [2] : vector<1x4x512xf32> to vector<1x4xf32>
    %92 = vector.shape_cast %91 : vector<1x4xf32> to vector<1x4x1xf32>
    %cst_15 = arith.constant dense<0.000000e+00> : vector<4x1xf32>
    %93 = vector.multi_reduction <add>, %92, %cst_15 [0] : vector<1x4x1xf32> to vector<4x1xf32>
    %94 = vector.shape_cast %93 : vector<4x1xf32> to vector<1x4x1xf32>
    %cst_16 = arith.constant 0.001953125 : f32
    %95 = vector.broadcast %cst_16 : f32 to vector<1x4x1xf32>
    %96 = arith.mulf %89, %95 : vector<1x4x1xf32>
    %cst_17 = arith.constant 0.001953125 : f32
    %97 = vector.broadcast %cst_17 : f32 to vector<1x4x1xf32>
    %98 = arith.mulf %94, %97 : vector<1x4x1xf32>
    %99 = arith.mulf %96, %96 : vector<1x4x1xf32>
    %100 = arith.subf %98, %99 : vector<1x4x1xf32>
    %c0_18 = arith.constant 0 : index
    %c0_19 = arith.constant 0 : index
    %101 = vector.load %arg2[%c0_18, %c0_19] : memref<4x3xf32, #tpu.memory_space<vmem>>, vector<4x1xf32>
    %c0_20 = arith.constant 0 : index
    %c1_21 = arith.constant 1 : index
    %102 = vector.load %arg2[%c0_20, %c1_21] : memref<4x3xf32, #tpu.memory_space<vmem>>, vector<4x1xf32>
    %c0_22 = arith.constant 0 : index
    %c2_23 = arith.constant 2 : index
    %103 = vector.load %arg2[%c0_22, %c2_23] : memref<4x3xf32, #tpu.memory_space<vmem>>, vector<4x1xf32>
    %cst_24 = arith.constant 9.99999974E-6 : f32
    %104 = vector.broadcast %cst_24 : f32 to vector<1x4x1xf32>
    %105 = arith.addf %100, %104 : vector<1x4x1xf32>
    %106 = math.rsqrt %105 : vector<1x4x1xf32>
    %107 = vector.shape_cast %101 : vector<4x1xf32> to vector<1x4x1xf32>
    %108 = arith.mulf %107, %106 : vector<1x4x1xf32>
    %109 = arith.mulf %96, %108 : vector<1x4x1xf32>
    %110 = vector.shape_cast %102 : vector<4x1xf32> to vector<1x4x1xf32>
    %111 = arith.subf %110, %109 : vector<1x4x1xf32>
    %112 = vector.broadcast %108 : vector<1x4x1xf32> to vector<1x4x512xf32>
    %113 = arith.mulf %85, %112 : vector<1x4x512xf32>
    %114 = vector.broadcast %111 : vector<1x4x1xf32> to vector<1x4x512xf32>
    %115 = arith.addf %113, %114 : vector<1x4x512xf32>
    %cst_25 = arith.constant 0.000000e+00 : f32
    %116 = vector.broadcast %cst_25 : f32 to vector<1x4x512xf32>
    %117 = arith.cmpf oge, %115, %116 : vector<1x4x512xf32>
    %118 = vector.shape_cast %103 : vector<4x1xf32> to vector<1x4x1xf32>
    %119 = vector.broadcast %118 : vector<1x4x1xf32> to vector<1x4x512xf32>
    %120 = arith.mulf %119, %115 : vector<1x4x512xf32>
    %121 = arith.select %117, %115, %120 : vector<1x4x512xi1>, vector<1x4x512xf32>
    %c0_26 = arith.constant 0 : index
    %c0_27 = arith.constant 0 : index
    %c0_28 = arith.constant 0 : index
    %122 = vector.load %arg5[%c0_26, %c0_27, %c0_28] : memref<1x4x512xf32, #tpu.memory_space<vmem>>, vector<1x4x512xf32>
    tpu.vector_store %arg5[%c0_26, %c0_27, %c0_28], %121 {strides = array<i32>} : memref<1x4x512xf32, #tpu.memory_space<vmem>>, vector<1x4x512xf32>,
    return
  }
  func.func @transform_0(%arg0: i32) -> (i32, i32) {
    %c0_i32 = arith.constant 0 : i32
    %c0_i32_0 = arith.constant 0 : i32
    return %arg0, %c0_i32 : i32, i32
  }
  func.func @transform_1(%arg0: i32) -> (i32, i32) {
    %c0_i32 = arith.constant 0 : i32
    %c0_i32_0 = arith.constant 0 : i32
    return %arg0, %c0_i32 : i32, i32
  }
  func.func @transform_2(%arg0: i32) -> (i32, i32) {
    %c0_i32 = arith.constant 0 : i32
    %c0_i32_0 = arith.constant 0 : i32
    %c0_i32_1 = arith.constant 0 : i32
    return %c0_i32, %c0_i32_0 : i32, i32
  }
  func.func @transform_3(%arg0: i32) -> (i32, i32, i32) {
    %c0_i32 = arith.constant 0 : i32
    %c0_i32_0 = arith.constant 0 : i32
    %c0_i32_1 = arith.constant 0 : i32
    return %c0_i32, %arg0, %c0_i32_0 : i32, i32, i32
  }
  func.func @transform_4(%arg0: i32) -> (i32, i32, i32) {
    %c0_i32 = arith.constant 0 : i32
    %c0_i32_0 = arith.constant 0 : i32
    %c0_i32_1 = arith.constant 0 : i32
    return %c0_i32, %arg0, %c0_i32_0 : i32, i32, i32
  }
}

</mosaic_0001>

<llo_original>
// kernel: tpu_custom_call.1
$region0: #{tpu_custom_call.1}
  #allocation0 [shape = 'u32[]', space=smem, size = 0x4, offset = 0x4, fixed_abs, tag = 'smem constant byte address 0x4 - core index']
  #allocation1 [shape = 'u32[144,128]{1,0:T(1,128)}', space=vmem, size = 0x12000, scoped, tag = 'internal scratch']
  %s0 = inlined_call_operand.hbm [shape: f32[4,9], index: 0, kind: input, shape index: {}]
  %s1 = inlined_call_operand.hbm [shape: f32[4,3], index: 1, kind: input, shape index: {}]
  %s2 = inlined_call_operand.hbm [shape: f32[8,512], index: 2, kind: input, shape index: {}]
  %s3 = inlined_call_operand.hbm [shape: f32[1,4,512], index: 3, kind: input, shape index: {}]
  %s4 = inlined_call_operand.hbm [shape: f32[1,4,512], index: 4, kind: output, shape index: {}]
  %s5 = sld [smem:[#allocation0]]
  $region42: #{tpu_custom_call.1} parent=0
    _
  %s7 = ssub.s32 1, %s5
  %s8 = scalar_select 0, %s7, %s5
  $region1: #{tpu_custom_call.1} parent=0
    #allocation2 [shape = 'u8[2048]{0}', space=vmem, size = 0x800, scoped, tag = 'input window, operand 0, single buffered']
    #allocation3 [shape = 's32[1]{0}', space=sflag, size = 0x4, scoped, tag = 'scoped memory for tpu_custom_call.1']
    #allocation4 [shape = 's32[1]{0}', space=sflag, size = 0x4, scoped, tag = 'scoped memory for tpu_custom_call.1']
    #allocation5 [shape = 'u8[2048]{0}', space=vmem, size = 0x800, scoped, tag = 'input window, operand 1, single buffered']
    #allocation6 [shape = 's32[1]{0}', space=sflag, size = 0x4, scoped, tag = 'scoped memory for tpu_custom_call.1']
    #allocation7 [shape = 'u8[16384]{0}', space=vmem, size = 0x4000, scoped, tag = 'input window, operand 2, single buffered']
    #allocation8 [shape = 'u8[8192]{0}', space=vmem, size = 0x2000, scoped, tag = 'input window, operand 3, single buffered']
    #allocation9 [shape = 's32[1]{0}', space=sflag, size = 0x4, scoped, tag = 'scoped memory for tpu_custom_call.1']
    #allocation10 [shape = 'u8[8192]{0}', space=vmem, size = 0x2000, scoped, tag = 'output window, operand 0, single buffered']
    %9 = vsyncpa [#allocation3], 0
    %10 = vsyncpa [#allocation6], 0
    %11 = vsyncpa [#allocation9], 0
    %12 = vsyncpa [#allocation4], 0
    // Predicated region
    $region2: #{tpu_custom_call.1} parent=1 // pred_check
      _
    $region3: #{tpu_custom_call.1} parent=1 // pred_check_branch
      %14 = sbr.rel (0) target = $region5
    $region4: #{tpu_custom_call.1} parent=1 // pred_region
      %s16 = ssub.s32 64, 64
      %17 = vsyncadd [#allocation3], %s16
      %s19 = sshll.u32 [#allocation2], 4
      %s20 = int_to_ptr.vmem [resolvable:$true] %s19
      %22 = dma.hbm_to_vmem [thread:$0]  %s0, 64, %s20, [#allocation3]
    $region5: #{tpu_custom_call.1} parent=1 // pred_fallthru
      _
    // Predicated region
    $region6: #{tpu_custom_call.1} parent=1 // pred_check
      _
    $region7: #{tpu_custom_call.1} parent=1 // pred_check_branch
      %24 = sbr.rel (0) target = $region9
    $region8: #{tpu_custom_call.1} parent=1 // pred_region
      %s26 = ssub.s32 64, 64
      %27 = vsyncadd [#allocation6], %s26
      %s29 = sshll.u32 [#allocation5], 4
      %s30 = int_to_ptr.vmem [resolvable:$true] %s29
      %32 = dma.hbm_to_vmem [thread:$0]  %s1, 64, %s30, [#allocation6]
    $region9: #{tpu_custom_call.1} parent=1 // pred_fallthru
      _
    // Predicated region
    $region10: #{tpu_custom_call.1} parent=1 // pred_check
      _
    $region11: #{tpu_custom_call.1} parent=1 // pred_check_branch
      %34 = sbr.rel (0) target = $region13
    $region12: #{tpu_custom_call.1} parent=1 // pred_region
      %s36 = ssub.s32 512, 512
      %37 = vsyncadd [#allocation6], %s36
      %s39 = sshll.u32 [#allocation7], 4
      %s40 = int_to_ptr.vmem [resolvable:$true] %s39
      %42 = dma.hbm_to_vmem [thread:$0]  %s2, 512, %s40, [#allocation6]
    $region13: #{tpu_custom_call.1} parent=1 // pred_fallthru
      _
    // Predicated region
    $region14: #{tpu_custom_call.1} parent=1 // pred_check
      _
    $region15: #{tpu_custom_call.1} parent=1 // pred_check_branch
      %44 = sbr.rel (0) target = $region17
    $region16: #{tpu_custom_call.1} parent=1 // pred_region
      %s46 = ssub.s32 256, 256
      %47 = vsyncadd [#allocation9], %s46
      %s49 = sshll.u32 [#allocation8], 4
      %s50 = int_to_ptr.vmem [resolvable:$true] %s49
      %52 = dma.hbm_to_vmem [thread:$0]  %s3, 256, %s50, [#allocation9]
    $region17: #{tpu_custom_call.1} parent=1 // pred_fallthru
      _
    // Predicated region
    $region18: #{tpu_custom_call.1} parent=1 // pred_check
      _
    $region19: #{tpu_custom_call.1} parent=1 // pred_check_branch
      %54 = sbr.rel (0) target = $region21
    $region20: #{tpu_custom_call.1} parent=1 // pred_region
      %55 = dma.done [#allocation3], 64
    $region21: #{tpu_custom_call.1} parent=1 // pred_fallthru
      _
    // Predicated region
    $region22: #{tpu_custom_call.1} parent=1 // pred_check
      _
    $region23: #{tpu_custom_call.1} parent=1 // pred_check_branch
      %57 = sbr.rel (0) target = $region25
    $region24: #{tpu_custom_call.1} parent=1 // pred_region
      %58 = dma.done [#allocation6], 64
    $region25: #{tpu_custom_call.1} parent=1 // pred_fallthru
      _
    // Predicated region
    $region26: #{tpu_custom_call.1} parent=1 // pred_check
      _
    $region27: #{tpu_custom_call.1} parent=1 // pred_check_branch
      %60 = sbr.rel (0) target = $region29
    $region28: #{tpu_custom_call.1} parent=1 // pred_region
      %61 = dma.done [#allocation6], 512
    $region29: #{tpu_custom_call.1} parent=1 // pred_fallthru
      _
    // Predicated region
    $region30: #{tpu_custom_call.1} parent=1 // pred_check
      _
    $region31: #{tpu_custom_call.1} parent=1 // pred_check_branch
      %63 = sbr.rel (0) target = $region33
    $region32: #{tpu_custom_call.1} parent=1 // pred_region
      %64 = dma.done [#allocation9], 256
    $region33: #{tpu_custom_call.1} parent=1 // pred_fallthru
      _
    %v65 = vld [vmem:[#allocation8] sm:$0xff]
    %v66 = vld [vmem:[#allocation8 + $0x8] sm:$0xff]
    %v67 = vld [vmem:[#allocation2] sm:$0xf]
    %69 = vset.pattern.permute.xlu0 4
    %70 = vperm.xlu0 %69, %v67
    %v71 = vpop.permute.xlu0 %70
    %v73 = vunpack.c.l.s4 839922192
    %v74 = vunpack.c.0.s8 %v73
    %v75 = vlaneseq
    %v76 = vshrl.u32 %v75, 7
    %v77 = vsub.s32 %v74, %v76
    %v78 = vrot.slane %v71, %v77
    %v80 = vmul.f32 %v65, %v78
    %v81 = vmul.f32 %v66, %v78
    %v84 = vcombine.high %v65, %v65
    %v85 = vcombine.high %v66, %v66
    %88 = vrot.lane.b32.xlu0 %v65, 17
    %v89 = vpop.permute.xlu0 %88
    %90 = vrot.lane.b32.xlu0 %v84, 17
    %v91 = vpop.permute.xlu0 %90
    %92 = vrot.lane.b32.xlu0 %v66, 17
    %v93 = vpop.permute.xlu0 %92
    %94 = vrot.lane.b32.xlu0 %v85, 17
    %v95 = vpop.permute.xlu0 %94
    %v96 = vlaneseq
    %v97 = vand.u32 %v96, 127
    %vm98 = vcmp.lt.s32.totalorder %v97, 17
    %v99 = vsel %vm98, %v93, %v95
    %v100 = vsel %vm98, %v91, %v93
    %v101 = vsel %vm98, %v89, %v91
    %v102 = vsel %vm98, %v95, %v89
    %v103 = vld [vmem:[#allocation7] ss:$8 sm:$0xf]
    %v105 = vlaneseq
    %v106 = vshrl.u32 %v105, 7
    %v107 = vsub.s32 0, %v106
    %v108 = vrot.slane %v103, %v107
    %v109 = vlaneseq
    %v110 = vshrl.u32 %v109, 7
    %v111 = vsub.s32 1, %v110
    %v112 = vrot.slane %v103, %v111
    %v113 = vlaneseq
    %v114 = vshrl.u32 %v113, 7
    %v115 = vsub.s32 2, %v114
    %v116 = vrot.slane %v103, %v115
    %v117 = vlaneseq
    %v118 = vshrl.u32 %v117, 7
    %v119 = vsub.s32 3, %v118
    %v120 = vrot.slane %v103, %v119
    %v125 = vmul.f32 %v102, %v108
    %v126 = vmul.f32 %v101, %v112
    %v127 = vmul.f32 %v100, %v116
    %v128 = vmul.f32 %v99, %v120
    %129 = vset.pattern.permute.xlu0 0
    %130 = vperm.xlu0 %129, %v67
    %v131 = vpop.permute.xlu0 %130
    %v133 = vmul.f32 %v125, %v131
    %v134 = vmul.f32 %v126, %v131
    %v135 = vmul.f32 %v127, %v131
    %v136 = vmul.f32 %v128, %v131
    %v141 = vcombine.low %v133, %v134
    %v142 = vcombine.low %v135, %v136
    %v145 = vadd.f32 %v80, %v141
    %v146 = vadd.f32 %v81, %v142
    %147 = vrot.lane.b32.xlu0 %v65, 16
    %v148 = vpop.permute.xlu0 %147
    %149 = vrot.lane.b32.xlu0 %v84, 16
    %v150 = vpop.permute.xlu0 %149
    %151 = vrot.lane.b32.xlu0 %v66, 16
    %v152 = vpop.permute.xlu0 %151
    %153 = vrot.lane.b32.xlu0 %v85, 16
    %v154 = vpop.permute.xlu0 %153
    %vm155 = vcmp.lt.s32.totalorder %v97, 16
    %v156 = vsel %vm155, %v152, %v154
    %v157 = vsel %vm155, %v150, %v152
    %v158 = vsel %vm155, %v148, %v150
    %v159 = vsel %vm155, %v154, %v148
    %s160 = scalar_lea.vmem [#allocation7], 1
    %v161 = vld [vmem:[%s160] ss:$8 sm:$0xf]
    %v163 = vlaneseq
    %v164 = vshrl.u32 %v163, 7
    %v165 = vsub.s32 0, %v164
    %v166 = vrot.slane %v161, %v165
    %v167 = vlaneseq
    %v168 = vshrl.u32 %v167, 7
    %v169 = vsub.s32 1, %v168
    %v170 = vrot.slane %v161, %v169
    %v171 = vlaneseq
    %v172 = vshrl.u32 %v171, 7
    %v173 = vsub.s32 2, %v172
    %v174 = vrot.slane %v161, %v173
    %v175 = vlaneseq
    %v176 = vshrl.u32 %v175, 7
    %v177 = vsub.s32 3, %v176
    %v178 = vrot.slane %v161, %v177
    %v183 = vmul.f32 %v159, %v166
    %v184 = vmul.f32 %v158, %v170
    %v185 = vmul.f32 %v157, %v174
    %v186 = vmul.f32 %v156, %v178
    %187 = vset.pattern.permute.xlu0 1
    %188 = vperm.xlu0 %187, %v67
    %v189 = vpop.permute.xlu0 %188
    %v191 = vmul.f32 %v183, %v189
    %v192 = vmul.f32 %v184, %v189
    %v193 = vmul.f32 %v185, %v189
    %v194 = vmul.f32 %v186, %v189
    %v199 = vcombine.low %v191, %v192
    %v200 = vcombine.low %v193, %v194
    %v203 = vadd.f32 %v145, %v199
    %v204 = vadd.f32 %v146, %v200
    %205 = vrot.lane.b32.xlu0 %v65, 15
    %v206 = vpop.permute.xlu0 %205
    %207 = vrot.lane.b32.xlu0 %v84, 15
    %v208 = vpop.permute.xlu0 %207
    %209 = vrot.lane.b32.xlu0 %v66, 15
    %v210 = vpop.permute.xlu0 %209
    %211 = vrot.lane.b32.xlu0 %v85, 15
    %v212 = vpop.permute.xlu0 %211
    %vm213 = vcmp.lt.s32.totalorder %v97, 15
    %v214 = vsel %vm213, %v210, %v212
    %v215 = vsel %vm213, %v208, %v210
    %v216 = vsel %vm213, %v206, %v208
    %v217 = vsel %vm213, %v212, %v206
    %s218 = scalar_lea.vmem [#allocation7], 2
    %v219 = vld [vmem:[%s218] ss:$8 sm:$0xf]
    %v221 = vlaneseq
    %v222 = vshrl.u32 %v221, 7
    %v223 = vsub.s32 0, %v222
    %v224 = vrot.slane %v219, %v223
    %v225 = vlaneseq
    %v226 = vshrl.u32 %v225, 7
    %v227 = vsub.s32 1, %v226
    %v228 = vrot.slane %v219, %v227
    %v229 = vlaneseq
    %v230 = vshrl.u32 %v229, 7
    %v231 = vsub.s32 2, %v230
    %v232 = vrot.slane %v219, %v231
    %v233 = vlaneseq
    %v234 = vshrl.u32 %v233, 7
    %v235 = vsub.s32 3, %v234
    %v236 = vrot.slane %v219, %v235
    %v241 = vmul.f32 %v217, %v224
    %v242 = vmul.f32 %v216, %v228
    %v243 = vmul.f32 %v215, %v232
    %v244 = vmul.f32 %v214, %v236
    %245 = vset.pattern.permute.xlu0 2
    %246 = vperm.xlu0 %245, %v67
    %v247 = vpop.permute.xlu0 %246
    %v249 = vmul.f32 %v241, %v247
    %v250 = vmul.f32 %v242, %v247
    %v251 = vmul.f32 %v243, %v247
    %v252 = vmul.f32 %v244, %v247
    %v257 = vcombine.low %v249, %v250
    %v258 = vcombine.low %v251, %v252
    %v261 = vadd.f32 %v203, %v257
    %v262 = vadd.f32 %v204, %v258
    %263 = vrot.lane.b32.xlu0 %v65, 1
    %v264 = vpop.permute.xlu0 %263
    %265 = vrot.lane.b32.xlu0 %v84, 1
    %v266 = vpop.permute.xlu0 %265
    %267 = vrot.lane.b32.xlu0 %v66, 1
    %v268 = vpop.permute.xlu0 %267
    %269 = vrot.lane.b32.xlu0 %v85, 1
    %v270 = vpop.permute.xlu0 %269
    %vm271 = vcmp.lt.s32.totalorder %v97, 1
    %v272 = vsel %vm271, %v268, %v270
    %v273 = vsel %vm271, %v266, %v268
    %v274 = vsel %vm271, %v264, %v266
    %v275 = vsel %vm271, %v270, %v264
    %s276 = scalar_lea.vmem [#allocation7], 3
    %v277 = vld [vmem:[%s276] ss:$8 sm:$0xf]
    %v279 = vlaneseq
    %v280 = vshrl.u32 %v279, 7
    %v281 = vsub.s32 0, %v280
    %v282 = vrot.slane %v277, %v281
    %v283 = vlaneseq
    %v284 = vshrl.u32 %v283, 7
    %v285 = vsub.s32 1, %v284
    %v286 = vrot.slane %v277, %v285
    %v287 = vlaneseq
    %v288 = vshrl.u32 %v287, 7
    %v289 = vsub.s32 2, %v288
    %v290 = vrot.slane %v277, %v289
    %v291 = vlaneseq
    %v292 = vshrl.u32 %v291, 7
    %v293 = vsub.s32 3, %v292
    %v294 = vrot.slane %v277, %v293
    %v299 = vmul.f32 %v275, %v282
    %v300 = vmul.f32 %v274, %v286
    %v301 = vmul.f32 %v273, %v290
    %v302 = vmul.f32 %v272, %v294
    %303 = vset.pattern.permute.xlu0 3
    %304 = vperm.xlu0 %303, %v67
    %v305 = vpop.permute.xlu0 %304
    %v307 = vmul.f32 %v299, %v305
    %v308 = vmul.f32 %v300, %v305
    %v309 = vmul.f32 %v301, %v305
    %v310 = vmul.f32 %v302, %v305
    %v315 = vcombine.low %v307, %v308
    %v316 = vcombine.low %v309, %v310
    %v319 = vadd.f32 %v261, %v315
    %v320 = vadd.f32 %v262, %v316
    %321 = vrot.lane.b32.xlu0 %v65, 127
    %v322 = vpop.permute.xlu0 %321
    %323 = vrot.lane.b32.xlu0 %v84, 127
    %v324 = vpop.permute.xlu0 %323
    %325 = vrot.lane.b32.xlu0 %v66, 127
    %v326 = vpop.permute.xlu0 %325
    %327 = vrot.lane.b32.xlu0 %v85, 127
    %v328 = vpop.permute.xlu0 %327
    %vm329 = vcmp.lt.s32.totalorder %v97, 127
    %v330 = vsel %vm329, %v326, %v328
    %v331 = vsel %vm329, %v324, %v326
    %v332 = vsel %vm329, %v322, %v324
    %v333 = vsel %vm329, %v328, %v322
    %s334 = scalar_lea.vmem [#allocation7], 4
    %v335 = vld [vmem:[%s334] ss:$8 sm:$0xf]
    %v337 = vlaneseq
    %v338 = vshrl.u32 %v337, 7
    %v339 = vsub.s32 0, %v338
    %v340 = vrot.slane %v335, %v339
    %v341 = vlaneseq
    %v342 = vshrl.u32 %v341, 7
    %v343 = vsub.s32 1, %v342
    %v344 = vrot.slane %v335, %v343
    %v345 = vlaneseq
    %v346 = vshrl.u32 %v345, 7
    %v347 = vsub.s32 2, %v346
    %v348 = vrot.slane %v335, %v347
    %v349 = vlaneseq
    %v350 = vshrl.u32 %v349, 7
    %v351 = vsub.s32 3, %v350
    %v352 = vrot.slane %v335, %v351
    %v357 = vmul.f32 %v332, %v340
    %v358 = vmul.f32 %v331, %v344
    %v359 = vmul.f32 %v330, %v348
    %v360 = vmul.f32 %v333, %v352
    %361 = vset.pattern.permute.xlu0 5
    %362 = vperm.xlu0 %361, %v67
    %v363 = vpop.permute.xlu0 %362
    %v365 = vmul.f32 %v357, %v363
    %v366 = vmul.f32 %v358, %v363
    %v367 = vmul.f32 %v359, %v363
    %v368 = vmul.f32 %v360, %v363
    %v373 = vcombine.low %v365, %v366
    %v374 = vcombine.low %v367, %v368
    %v377 = vadd.f32 %v319, %v373
    %v378 = vadd.f32 %v320, %v374
    %379 = vrot.lane.b32.xlu0 %v65, 113
    %v380 = vpop.permute.xlu0 %379
    %381 = vrot.lane.b32.xlu0 %v84, 113
    %v382 = vpop.permute.xlu0 %381
    %383 = vrot.lane.b32.xlu0 %v66, 113
    %v384 = vpop.permute.xlu0 %383
    %385 = vrot.lane.b32.xlu0 %v85, 113
    %v386 = vpop.permute.xlu0 %385
    %vm387 = vcmp.lt.s32.totalorder %v97, 113
    %v388 = vsel %vm387, %v384, %v386
    %v389 = vsel %vm387, %v382, %v384
    %v390 = vsel %vm387, %v380, %v382
    %v391 = vsel %vm387, %v386, %v380
    %s392 = scalar_lea.vmem [#allocation7], 5
    %v393 = vld [vmem:[%s392] ss:$8 sm:$0xf]
    %v395 = vlaneseq
    %v396 = vshrl.u32 %v395, 7
    %v397 = vsub.s32 0, %v396
    %v398 = vrot.slane %v393, %v397
    %v399 = vlaneseq
    %v400 = vshrl.u32 %v399, 7
    %v401 = vsub.s32 1, %v400
    %v402 = vrot.slane %v393, %v401
    %v403 = vlaneseq
    %v404 = vshrl.u32 %v403, 7
    %v405 = vsub.s32 2, %v404
    %v406 = vrot.slane %v393, %v405
    %v407 = vlaneseq
    %v408 = vshrl.u32 %v407, 7
    %v409 = vsub.s32 3, %v408
    %v410 = vrot.slane %v393, %v409
    %v415 = vmul.f32 %v390, %v398
    %v416 = vmul.f32 %v389, %v402
    %v417 = vmul.f32 %v388, %v406
    %v418 = vmul.f32 %v391, %v410
    %419 = vset.pattern.permute.xlu0 6
    %420 = vperm.xlu0 %419, %v67
    %v421 = vpop.permute.xlu0 %420
    %v423 = vmul.f32 %v415, %v421
    %v424 = vmul.f32 %v416, %v421
    %v425 = vmul.f32 %v417, %v421
    %v426 = vmul.f32 %v418, %v421
    %v431 = vcombine.low %v423, %v424
    %v432 = vcombine.low %v425, %v426
    %v435 = vadd.f32 %v377, %v431
    %v436 = vadd.f32 %v378, %v432
    %437 = vrot.lane.b32.xlu0 %v65, 112
    %v438 = vpop.permute.xlu0 %437
    %439 = vrot.lane.b32.xlu0 %v84, 112
    %v440 = vpop.permute.xlu0 %439
    %441 = vrot.lane.b32.xlu0 %v66, 112
    %v442 = vpop.permute.xlu0 %441
    %443 = vrot.lane.b32.xlu0 %v85, 112
    %v444 = vpop.permute.xlu0 %443
    %vm445 = vcmp.lt.s32.totalorder %v97, 112
    %v446 = vsel %vm445, %v442, %v444
    %v447 = vsel %vm445, %v440, %v442
    %v448 = vsel %vm445, %v438, %v440
    %v449 = vsel %vm445, %v444, %v438
    %s450 = scalar_lea.vmem [#allocation7], 6
    %v451 = vld [vmem:[%s450] ss:$8 sm:$0xf]
    %v453 = vlaneseq
    %v454 = vshrl.u32 %v453, 7
    %v455 = vsub.s32 0, %v454
    %v456 = vrot.slane %v451, %v455
    %v457 = vlaneseq
    %v458 = vshrl.u32 %v457, 7
    %v459 = vsub.s32 1, %v458
    %v460 = vrot.slane %v451, %v459
    %v461 = vlaneseq
    %v462 = vshrl.u32 %v461, 7
    %v463 = vsub.s32 2, %v462
    %v464 = vrot.slane %v451, %v463
    %v465 = vlaneseq
    %v466 = vshrl.u32 %v465, 7
    %v467 = vsub.s32 3, %v466
    %v468 = vrot.slane %v451, %v467
    %v473 = vmul.f32 %v448, %v456
    %v474 = vmul.f32 %v447, %v460
    %v475 = vmul.f32 %v446, %v464
    %v476 = vmul.f32 %v449, %v468
    %477 = vset.pattern.permute.xlu0 7
    %478 = vperm.xlu0 %477, %v67
    %v479 = vpop.permute.xlu0 %478
    %v481 = vmul.f32 %v473, %v479
    %v482 = vmul.f32 %v474, %v479
    %v483 = vmul.f32 %v475, %v479
    %v484 = vmul.f32 %v476, %v479
    %v489 = vcombine.low %v481, %v482
    %v490 = vcombine.low %v483, %v484
    %v493 = vadd.f32 %v435, %v489
    %v494 = vadd.f32 %v436, %v490
    %495 = vrot.lane.b32.xlu0 %v65, 111
    %v496 = vpop.permute.xlu0 %495
    %497 = vrot.lane.b32.xlu0 %v84, 111
    %v498 = vpop.permute.xlu0 %497
    %499 = vrot.lane.b32.xlu0 %v66, 111
    %v500 = vpop.permute.xlu0 %499
    %501 = vrot.lane.b32.xlu0 %v85, 111
    %v502 = vpop.permute.xlu0 %501
    %vm503 = vcmp.lt.s32.totalorder %v97, 111
    %v504 = vsel %vm503, %v500, %v502
    %v505 = vsel %vm503, %v498, %v500
    %v506 = vsel %vm503, %v496, %v498
    %v507 = vsel %vm503, %v502, %v496
    %s508 = scalar_lea.vmem [#allocation7], 7
    %v509 = vld [vmem:[%s508] ss:$8 sm:$0xf]
    %v511 = vlaneseq
    %v512 = vshrl.u32 %v511, 7
    %v513 = vsub.s32 0, %v512
    %v514 = vrot.slane %v509, %v513
    %v515 = vlaneseq
    %v516 = vshrl.u32 %v515, 7
    %v517 = vsub.s32 1, %v516
    %v518 = vrot.slane %v509, %v517
    %v519 = vlaneseq
    %v520 = vshrl.u32 %v519, 7
    %v521 = vsub.s32 2, %v520
    %v522 = vrot.slane %v509, %v521
    %v523 = vlaneseq
    %v524 = vshrl.u32 %v523, 7
    %v525 = vsub.s32 3, %v524
    %v526 = vrot.slane %v509, %v525
    %v531 = vmul.f32 %v506, %v514
    %v532 = vmul.f32 %v505, %v518
    %v533 = vmul.f32 %v504, %v522
    %v534 = vmul.f32 %v507, %v526
    %535 = vset.pattern.permute.xlu0 8
    %536 = vperm.xlu0 %535, %v67
    %v537 = vpop.permute.xlu0 %536
    %v539 = vmul.f32 %v531, %v537
    %v540 = vmul.f32 %v532, %v537
    %v541 = vmul.f32 %v533, %v537
    %v542 = vmul.f32 %v534, %v537
    %v547 = vcombine.low %v539, %v540
    %v548 = vcombine.low %v541, %v542
    %v551 = vadd.f32 %v493, %v547
    %v552 = vadd.f32 %v494, %v548
    %v555 = vcombine.high %v551, %v551
    %v556 = vcombine.high %v552, %v552
    %vm559 = vcmask 1043456
    %v560 = vsel %vm559, %v551, 0.0
    %v561 = vsel %vm559, %v555, 0.0
    %v562 = vadd.f32 %v560, %v561
    %v563 = vsel %vm559, %v552, 0.0
    %v564 = vadd.f32 %v562, %v563
    %v565 = vsel %vm559, %v556, 0.0
    %v566 = vadd.f32 %v564, %v565
    %567 = vadd.xlane.f32.xlu0 %v566
    %v568 = vpop.xlane.xlu0 %567
    %v569 = vadd.f32 %v568, 0.0
    %v570 = vmul.f32 %v551, %v551
    %v571 = vmul.f32 %v552, %v552
    %v574 = vcombine.high %v570, %v570
    %v575 = vcombine.high %v571, %v571
    %v578 = vsel %vm559, %v570, 0.0
    %v579 = vsel %vm559, %v574, 0.0
    %v580 = vadd.f32 %v578, %v579
    %v581 = vsel %vm559, %v571, 0.0
    %v582 = vadd.f32 %v580, %v581
    %v583 = vsel %vm559, %v575, 0.0
    %v584 = vadd.f32 %v582, %v583
    %585 = vadd.xlane.f32.xlu0 %v584
    %v586 = vpop.xlane.xlu0 %585
    %v587 = vadd.f32 %v586, 0.0
    %v588 = vmul.f32 %v569, 0.001953125
    %v589 = vmul.f32 %v587, 0.001953125
    %v590 = vmul.f32 %v588, %v588
    %v591 = vsub.f32 %v589, %v590
    %v592 = vld [vmem:[#allocation5] sm:$0xf]
    %v593 = vadd.f32 %v591, 1e-05
    %v594 = vrsqrt.pop %v593
    %v595 = vmul.f32 %v592, %v594
    %v596 = vmul.f32 %v588, %v595
    %598 = vrot.lane.b32.xlu0 %v596, 1
    %v599 = vpop.permute.xlu0 %598
    %v601 = vsub.f32 %v592, %v599
    %603 = vset.pattern.permute.xlu0 0
    %604 = vperm.xlu0 %603, %v595
    %v605 = vpop.permute.xlu0 %604
    %v607 = vunpack.c.l.s4 839922192
    %v608 = vunpack.c.0.s8 %v607
    %v609 = vlaneseq
    %v610 = vshrl.u32 %v609, 7
    %v611 = vsub.s32 %v608, %v610
    %v612 = vrot.slane %v605, %v611
    %v614 = vmul.f32 %v551, %v612
    %v615 = vmul.f32 %v552, %v612
    %617 = vset.pattern.permute.xlu0 1
    %618 = vperm.xlu0 %617, %v601
    %v619 = vpop.permute.xlu0 %618
    %v621 = vunpack.c.l.s4 839922192
    %v622 = vunpack.c.0.s8 %v621
    %v623 = vlaneseq
    %v624 = vshrl.u32 %v623, 7
    %v625 = vsub.s32 %v622, %v624
    %v626 = vrot.slane %v619, %v625
    %v628 = vadd.f32 %v614, %v626
    %v629 = vadd.f32 %v615, %v626
    %vm630 = vcmp.ge.f32.partialorder %v628, 0.0
    %vm631 = vcmp.ge.f32.partialorder %v629, 0.0
    %633 = vset.pattern.permute.xlu0 2
    %634 = vperm.xlu0 %633, %v592
    %v635 = vpop.permute.xlu0 %634
    %v639 = vcombine.high %v628, %v628
    %v640 = vcombine.high %v629, %v629
    %v643 = vmul.f32 %v635, %v628
    %v644 = vmul.f32 %v635, %v639
    %v645 = vmul.f32 %v635, %v629
    %v646 = vmul.f32 %v635, %v640
    %v651 = vcombine.low %v643, %v644
    %v652 = vcombine.low %v645, %v646
    %v655 = vsel %vm630, %v628, %v651
    %v656 = vsel %vm631, %v629, %v652
    %657 = vst [vmem:[#allocation10] sm:$0xff] %v655
    %658 = vst [vmem:[#allocation10 + $0x8] sm:$0xff] %v656
    // Predicated region
    $region34: #{tpu_custom_call.1} parent=1 // pred_check
      _
    $region35: #{tpu_custom_call.1} parent=1 // pred_check_branch
      %660 = sbr.rel (0) target = $region37
    $region36: #{tpu_custom_call.1} parent=1 // pred_region
      %s662 = ssub.s32 256, 256
      %663 = vsyncadd [#allocation4], %s662
      %s665 = sshll.u32 [#allocation10], 4
      %s666 = int_to_ptr.vmem [resolvable:$true] %s665
      %668 = dma.vmem_to_hbm [thread:$0]  %s666, 256, %s4, [#allocation4]
    $region37: #{tpu_custom_call.1} parent=1 // pred_fallthru
      _
    // Predicated region
    $region38: #{tpu_custom_call.1} parent=1 // pred_check
      _
    $region39: #{tpu_custom_call.1} parent=1 // pred_check_branch
      %670 = sbr.rel (0) target = $region41
    $region40: #{tpu_custom_call.1} parent=1 // pred_region
      %671 = dma.done [#allocation4], 256
    $region41: #{tpu_custom_call.1} parent=1 // pred_fallthru
      _
    %672 = vsyncpa [#allocation3], 1
    %673 = vsyncpa [#allocation6], 1
    %674 = vsyncpa [#allocation9], 1
    %675 = vsyncpa [#allocation4], 1

</llo_original>
